<compile_context>
chip_gen: v5e
topology: v5e:2x2
jax: 0.10.0
libtpu: 0.0.40
codegen_flags: <defaults>
</compile_context>

<pallas_src>
import functools

import jax
import jax.numpy as jnp
from jax.experimental import pallas as pl
from jax.experimental.pallas import tpu as pltpu

LANE = 128        # lane width (last-dim tiling unit)
SUBLANE = 8       # sublane height (second-to-last-dim tiling unit)
TILE_B_MAX = 1024 # safe across v5e/v6e/v7x scoped-VMEM defaults; sweep 2048+ on v6e

H1, H2, H3 = 256, 256, 128


def _round_up(v, m):
    return (v + m - 1) // m * m


def _mlp_kernel(x_ref,
                w1_ref, b1_ref,
                w2_ref, b2_ref,
                w3_ref, b3_ref,
                w4_ref, b4_ref,
                o_ref):
    """One batch tile of the 4-layer MLP: bf16 MXU inputs, f32 accumulation,
    f32 element-wise bias-add + ReLU."""
    x = x_ref[...].astype(jnp.bfloat16)

    h = jnp.dot(x, w1_ref[...], preferred_element_type=jnp.float32) + b1_ref[...]
    h = jnp.maximum(h, 0.0)

    h = jnp.dot(h.astype(jnp.bfloat16), w2_ref[...],
                preferred_element_type=jnp.float32) + b2_ref[...]
    h = jnp.maximum(h, 0.0)

    h = jnp.dot(h.astype(jnp.bfloat16), w3_ref[...],
                preferred_element_type=jnp.float32) + b3_ref[...]
    h = jnp.maximum(h, 0.0)

    out = jnp.dot(h.astype(jnp.bfloat16), w4_ref[...],
                  preferred_element_type=jnp.float32) + b4_ref[...]
    o_ref[...] = out.astype(o_ref.dtype)


def prepare_params(params):
    """One-time conversion of f32 PyTorch-style params to kernel layout:
    bf16 weights (halves weight DMA), f32 biases, final layer zero-padded to a
    lane-dense 128-wide output. Call ONCE, not inside the per-step forward."""
    total_models = params["w4"].shape[1]
    n_pad = _round_up(max(total_models, LANE), LANE)

    w4, b4 = params["w4"], params["b4"]
    if n_pad != total_models:
        w4 = jnp.pad(w4, ((0, 0), (0, n_pad - total_models)))
        b4 = jnp.pad(b4, ((0, 0), (0, n_pad - total_models)))

    return {
        "w1": params["w1"].astype(jnp.bfloat16), "b1": params["b1"],
        "w2": params["w2"].astype(jnp.bfloat16), "b2": params["b2"],
        "w3": params["w3"].astype(jnp.bfloat16), "b3": params["b3"],
        "w4": w4.astype(jnp.bfloat16),           "b4": b4,
    }


@functools.partial(jax.jit, static_argnames=("total_models", "tile_b_max"))
def replacement_dqn_forward(x, kparams, total_models, *, tile_b_max=TILE_B_MAX):
    """x: (B, n_observations) f32. kparams: output of prepare_params."""
    B, n_obs = x.shape
    n_pad = kparams["w4"].shape[1]

    # Align the batch only to the sublane height (<= 7 zero rows); no pad to a
    # multiple of tile_b -- Pallas masks the partial edge block.
    b_aligned = _round_up(max(B, SUBLANE), SUBLANE)
    if b_aligned != B:
        x = jnp.pad(x, ((0, b_aligned - B), (0, 0)))

    # >= 2 grid steps whenever the batch allows it (fills both v7x TCs via the
    # "parallel" axis), capped by tile_b_max (v5e 16 MiB scoped-VMEM friendly).
    tile_b = min(tile_b_max, _round_up(pl.cdiv(b_aligned, 2), SUBLANE))
    grid = (pl.cdiv(b_aligned, tile_b),)

    w1, b1 = kparams["w1"], kparams["b1"]
    w2, b2 = kparams["w2"], kparams["b2"]
    w3, b3 = kparams["w3"], kparams["b3"]
    w4, b4 = kparams["w4"], kparams["b4"]

    def resident(arr):
        # Same block index every grid step -> stays VMEM-resident, DMA'd once.
        return pl.BlockSpec(arr.shape, lambda i: (0, 0))

    weight_bytes = sum(a.size * a.dtype.itemsize
                       for a in (w1, w2, w3, w4, b1, b2, b3, b4))
    flops = 2 * b_aligned * (n_obs * H1 + H1 * H2 + H2 * H3 + H3 * n_pad)
    bytes_accessed = (x.size * x.dtype.itemsize
                      + b_aligned * n_pad * 4
                      + weight_bytes)

    out = pl.pallas_call(
        _mlp_kernel,
        out_shape=jax.ShapeDtypeStruct((b_aligned, n_pad), jnp.float32),
        grid_spec=pltpu.PrefetchScalarGridSpec(
            num_scalar_prefetch=0,
            grid=grid,
            in_specs=[
                pl.BlockSpec((tile_b, n_obs), lambda i: (i, 0)),
                resident(w1), resident(b1),
                resident(w2), resident(b2),
                resident(w3), resident(b3),
                resident(w4), resident(b4),
            ],
            out_specs=pl.BlockSpec((tile_b, n_pad), lambda i: (i, 0)),
        ),
        compiler_params=pltpu.CompilerParams(
            dimension_semantics=("parallel",)),
        cost_estimate=pl.CostEstimate(
            flops=flops, transcendentals=0, bytes_accessed=bytes_accessed),
    )(x, w1, b1, w2, b2, w3, b3, w4, b4)

    # Kernel stores stay lane-dense (128 lanes -> full-width vst); narrowing
    # out_specs to total_models lanes would force masked vst.msk partial stores.
    return out[:B, :total_models]


def init_params(key, n_observations, total_models):
    """Deterministic init mimicking PyTorch Linear (uniform +- 1/sqrt(fan_in)).
    Weights stored transposed to (in, out); biases as (1, out). f32."""
    dims = [(n_observations, H1), (H1, H2), (H2, H3), (H3, total_models)]
    params = {}
    for idx, (fan_in, fan_out) in enumerate(dims, start=1):
        key, kw, kb = jax.random.split(key, 3)
        bound = 1.0 / jnp.sqrt(jnp.float32(fan_in))
        params[f"w{idx}"] = jax.random.uniform(
            kw, (fan_in, fan_out), jnp.float32, minval=-bound, maxval=bound)
        params[f"b{idx}"] = jax.random.uniform(
            kb, (1, fan_out), jnp.float32, minval=-bound, maxval=bound)
    return params


def reference_forward_f32(x, params):
    """Plain f32 JAX reference of the PyTorch forward."""
    h = jnp.maximum(x @ params["w1"] + params["b1"], 0.0)
    h = jnp.maximum(h @ params["w2"] + params["b2"], 0.0)
    h = jnp.maximum(h @ params["w3"] + params["b3"], 0.0)
    return h @ params["w4"] + params["b4"]


def reference_forward_bf16(x, params):
    """Reference mirroring the kernel's precision (bf16 MXU, f32 accumulate)."""
    def mm(a, w):
        return jnp.dot(a.astype(jnp.bfloat16), w.astype(jnp.bfloat16),
                       preferred_element_type=jnp.float32)
    h = jnp.maximum(mm(x, params["w1"]) + params["b1"], 0.0)
    h = jnp.maximum(mm(h, params["w2"]) + params["b2"], 0.0)
    h = jnp.maximum(mm(h, params["w3"]) + params["b3"], 0.0)
    return mm(h, params["w4"]) + params["b4"]


if __name__ == "__main__":
    n_observations = 32
    total_models = 16

    key = jax.random.PRNGKey(0)
    key, kx1, kx2 = jax.random.split(key, 3)
    params = init_params(key, n_observations, total_models)
    kparams = prepare_params(params)   # one-time cast/pad to kernel layout

    # Case 1: small batch (single grid step).
    batch = 8
    x = jax.random.normal(kx1, (batch, n_observations), jnp.float32)
    out = jax.block_until_ready(replacement_dqn_forward(x, kparams, total_models))
    assert out.shape == (batch, total_models)
    assert jnp.allclose(out, reference_forward_bf16(x, params),
                        atol=2e-3, rtol=2e-3), "mismatch vs bf16 reference"
    assert jnp.allclose(out, reference_forward_f32(x, params),
                        atol=5e-2, rtol=5e-2), "mismatch vs f32 reference"

    # Case 2: ragged batch (exercises 2 grid steps + masked partial edge block).
    batch2 = 20
    x2 = jax.random.normal(kx2, (batch2, n_observations), jnp.float32)
    out2 = jax.block_until_ready(replacement_dqn_forward(x2, kparams, total_models))
    assert out2.shape == (batch2, total_models)
    assert jnp.allclose(out2, reference_forward_bf16(x2, params),
                        atol=2e-3, rtol=2e-3), "ragged batch mismatch vs bf16 reference"

    print("KERNEL_OK")
</pallas_src>

<mosaic_0001>
module attributes {stable_mosaic.version = 11 : i64} {
  func.func @_mlp_kernel(%arg0: i32, %arg1: memref<8x32xf32, #tpu.memory_space<vmem>>, %arg2: memref<32x256xbf16, #tpu.memory_space<vmem>>, %arg3: memref<1x256xf32, #tpu.memory_space<vmem>>, %arg4: memref<256x256xbf16, #tpu.memory_space<vmem>>, %arg5: memref<1x256xf32, #tpu.memory_space<vmem>>, %arg6: memref<256x128xbf16, #tpu.memory_space<vmem>>, %arg7: memref<1x128xf32, #tpu.memory_space<vmem>>, %arg8: memref<128x128xbf16, #tpu.memory_space<vmem>>, %arg9: memref<1x128xf32, #tpu.memory_space<vmem>>, %arg10: memref<8x128xf32, #tpu.memory_space<vmem>>) attributes {dimension_semantics = [#tpu.dimension_semantics<parallel>], iteration_bounds = array<i64: 1>, scalar_prefetch = 0 : i64, scratch_operands = 0 : i64, tpu.core_type = #tpu.core_type<tc>, window_params = [{transform_indices = @transform_0, window_bounds = array<i64: 8, 32>}, {pipeline_mode = #tpu.pipeline_mode<synchronous>, transform_indices = @transform_1, window_bounds = array<i64: 32, 256>}, {pipeline_mode = #tpu.pipeline_mode<synchronous>, transform_indices = @transform_2, window_bounds = array<i64: 1, 256>}, {pipeline_mode = #tpu.pipeline_mode<synchronous>, transform_indices = @transform_3, window_bounds = array<i64: 256, 256>}, {pipeline_mode = #tpu.pipeline_mode<synchronous>, transform_indices = @transform_4, window_bounds = array<i64: 1, 256>}, {pipeline_mode = #tpu.pipeline_mode<synchronous>, transform_indices = @transform_5, window_bounds = array<i64: 256, 128>}, {pipeline_mode = #tpu.pipeline_mode<synchronous>, transform_indices = @transform_6, window_bounds = array<i64: 1, 128>}, {pipeline_mode = #tpu.pipeline_mode<synchronous>, transform_indices = @transform_7, window_bounds = array<i64: 128, 128>}, {pipeline_mode = #tpu.pipeline_mode<synchronous>, transform_indices = @transform_8, window_bounds = array<i64: 1, 128>}, {transform_indices = @transform_9, window_bounds = array<i64: 8, 128>}]} {
    %c0 = arith.constant 0 : index
    %c0_0 = arith.constant 0 : index
    %0 = vector.load %arg1[%c0, %c0_0] : memref<8x32xf32, #tpu.memory_space<vmem>>, vector<8x32xf32>
    %1 = arith.truncf %0 : vector<8x32xf32> to vector<8x32xbf16>
    %c0_1 = arith.constant 0 : index
    %c0_2 = arith.constant 0 : index
    %2 = vector.load %arg2[%c0_1, %c0_2] : memref<32x256xbf16, #tpu.memory_space<vmem>>, vector<32x256xbf16>
    %cst = arith.constant dense<0.000000e+00> : vector<8x256xf32>
    %3 = tpu.matmul %1, %2, %cst {dimension_numbers = #tpu.dot_dimension_numbers<[1], [0], [0], [1], [0, 0, 1, 1], [], []>} : vector<8x32xbf16>, vector<32x256xbf16>, vector<8x256xf32> -> vector<8x256xf32>
    %c0_3 = arith.constant 0 : index
    %c0_4 = arith.constant 0 : index
    %4 = vector.load %arg3[%c0_3, %c0_4] : memref<1x256xf32, #tpu.memory_space<vmem>>, vector<1x256xf32>
    %5 = vector.broadcast %4 : vector<1x256xf32> to vector<8x256xf32>
    %6 = arith.addf %3, %5 : vector<8x256xf32>
    %cst_5 = arith.constant 0.000000e+00 : f32
    %7 = vector.broadcast %cst_5 : f32 to vector<8x256xf32>
    %8 = arith.maximumf %6, %7 : vector<8x256xf32>
    %9 = arith.truncf %8 : vector<8x256xf32> to vector<8x256xbf16>
    %c0_6 = arith.constant 0 : index
    %c0_7 = arith.constant 0 : index
    %10 = vector.load %arg4[%c0_6, %c0_7] : memref<256x256xbf16, #tpu.memory_space<vmem>>, vector<256x256xbf16>
    %cst_8 = arith.constant dense<0.000000e+00> : vector<8x256xf32>
    %11 = tpu.matmul %9, %10, %cst_8 {dimension_numbers = #tpu.dot_dimension_numbers<[1], [0], [0], [1], [0, 0, 1, 1], [], []>} : vector<8x256xbf16>, vector<256x256xbf16>, vector<8x256xf32> -> vector<8x256xf32>
    %c0_9 = arith.constant 0 : index
    %c0_10 = arith.constant 0 : index
    %12 = vector.load %arg5[%c0_9, %c0_10] : memref<1x256xf32, #tpu.memory_space<vmem>>, vector<1x256xf32>
    %13 = vector.broadcast %12 : vector<1x256xf32> to vector<8x256xf32>
    %14 = arith.addf %11, %13 : vector<8x256xf32>
    %cst_11 = arith.constant 0.000000e+00 : f32
    %15 = vector.broadcast %cst_11 : f32 to vector<8x256xf32>
    %16 = arith.maximumf %14, %15 : vector<8x256xf32>
    %17 = arith.truncf %16 : vector<8x256xf32> to vector<8x256xbf16>
    %c0_12 = arith.constant 0 : index
    %c0_13 = arith.constant 0 : index
    %18 = vector.load %arg6[%c0_12, %c0_13] : memref<256x128xbf16, #tpu.memory_space<vmem>>, vector<256x128xbf16>
    %cst_14 = arith.constant dense<0.000000e+00> : vector<8x128xf32>
    %19 = tpu.matmul %17, %18, %cst_14 {dimension_numbers = #tpu.dot_dimension_numbers<[1], [0], [0], [1], [0, 0, 1, 1], [], []>} : vector<8x256xbf16>, vector<256x128xbf16>, vector<8x128xf32> -> vector<8x128xf32>
    %c0_15 = arith.constant 0 : index
    %c0_16 = arith.constant 0 : index
    %20 = vector.load %arg7[%c0_15, %c0_16] : memref<1x128xf32, #tpu.memory_space<vmem>>, vector<1x128xf32>
    %21 = vector.broadcast %20 : vector<1x128xf32> to vector<8x128xf32>
    %22 = arith.addf %19, %21 : vector<8x128xf32>
    %cst_17 = arith.constant 0.000000e+00 : f32
    %23 = vector.broadcast %cst_17 : f32 to vector<8x128xf32>
    %24 = arith.maximumf %22, %23 : vector<8x128xf32>
    %25 = arith.truncf %24 : vector<8x128xf32> to vector<8x128xbf16>
    %c0_18 = arith.constant 0 : index
    %c0_19 = arith.constant 0 : index
    %26 = vector.load %arg8[%c0_18, %c0_19] : memref<128x128xbf16, #tpu.memory_space<vmem>>, vector<128x128xbf16>
    %cst_20 = arith.constant dense<0.000000e+00> : vector<8x128xf32>
    %27 = tpu.matmul %25, %26, %cst_20 {dimension_numbers = #tpu.dot_dimension_numbers<[1], [0], [0], [1], [0, 0, 1, 1], [], []>} : vector<8x128xbf16>, vector<128x128xbf16>, vector<8x128xf32> -> vector<8x128xf32>
    %c0_21 = arith.constant 0 : index
    %c0_22 = arith.constant 0 : index
    %28 = vector.load %arg9[%c0_21, %c0_22] : memref<1x128xf32, #tpu.memory_space<vmem>>, vector<1x128xf32>
    %29 = vector.broadcast %28 : vector<1x128xf32> to vector<8x128xf32>
    %30 = arith.addf %27, %29 : vector<8x128xf32>
    %c0_23 = arith.constant 0 : index
    %c0_24 = arith.constant 0 : index
    %31 = vector.load %arg10[%c0_23, %c0_24] : memref<8x128xf32, #tpu.memory_space<vmem>>, vector<8x128xf32>
    tpu.vector_store %arg10[%c0_23, %c0_24], %30 {strides = array<i32>} : memref<8x128xf32, #tpu.memory_space<vmem>>, vector<8x128xf32>,
    return
  }
  func.func @transform_0(%arg0: i32) -> (i32, i32) {
    %c0_i32 = arith.constant 0 : i32
    %c0_i32_0 = arith.constant 0 : i32
    return %arg0, %c0_i32 : i32, i32
  }
  func.func @transform_1(%arg0: i32) -> (i32, i32) {
    %c0_i32 = arith.constant 0 : i32
    %c0_i32_0 = arith.constant 0 : i32
    %c0_i32_1 = arith.constant 0 : i32
    return %c0_i32, %c0_i32_0 : i32, i32
  }
  func.func @transform_2(%arg0: i32) -> (i32, i32) {
    %c0_i32 = arith.constant 0 : i32
    %c0_i32_0 = arith.constant 0 : i32
    %c0_i32_1 = arith.constant 0 : i32
    return %c0_i32, %c0_i32_0 : i32, i32
  }
  func.func @transform_3(%arg0: i32) -> (i32, i32) {
    %c0_i32 = arith.constant 0 : i32
    %c0_i32_0 = arith.constant 0 : i32
    %c0_i32_1 = arith.constant 0 : i32
    return %c0_i32, %c0_i32_0 : i32, i32
  }
  func.func @transform_4(%arg0: i32) -> (i32, i32) {
    %c0_i32 = arith.constant 0 : i32
    %c0_i32_0 = arith.constant 0 : i32
    %c0_i32_1 = arith.constant 0 : i32
    return %c0_i32, %c0_i32_0 : i32, i32
  }
  func.func @transform_5(%arg0: i32) -> (i32, i32) {
    %c0_i32 = arith.constant 0 : i32
    %c0_i32_0 = arith.constant 0 : i32
    %c0_i32_1 = arith.constant 0 : i32
    return %c0_i32, %c0_i32_0 : i32, i32
  }
  func.func @transform_6(%arg0: i32) -> (i32, i32) {
    %c0_i32 = arith.constant 0 : i32
    %c0_i32_0 = arith.constant 0 : i32
    %c0_i32_1 = arith.constant 0 : i32
    return %c0_i32, %c0_i32_0 : i32, i32
  }
  func.func @transform_7(%arg0: i32) -> (i32, i32) {
    %c0_i32 = arith.constant 0 : i32
    %c0_i32_0 = arith.constant 0 : i32
    %c0_i32_1 = arith.constant 0 : i32
    return %c0_i32, %c0_i32_0 : i32, i32
  }
  func.func @transform_8(%arg0: i32) -> (i32, i32) {
    %c0_i32 = arith.constant 0 : i32
    %c0_i32_0 = arith.constant 0 : i32
    %c0_i32_1 = arith.constant 0 : i32
    return %c0_i32, %c0_i32_0 : i32, i32
  }
  func.func @transform_9(%arg0: i32) -> (i32, i32) {
    %c0_i32 = arith.constant 0 : i32
    %c0_i32_0 = arith.constant 0 : i32
    return %arg0, %c0_i32 : i32, i32
  }
}

</mosaic_0001>

<llo_original>
// kernel: replacement_dqn_forward.1
$region0: #{replacement_dqn_forward.1}
  #allocation0 [shape = 'u32[]', space=smem, size = 0x4, offset = 0x4, fixed_abs, tag = 'smem constant byte address 0x4 - core index']
  #allocation1 [shape = 'u32[72,128]{1,0:T(1,128)}', space=vmem, size = 0x9000, scoped, tag = 'internal scratch']
  %s0 = inlined_call_operand.hbm [shape: f32[8,32], index: 0, kind: input, shape index: {}]
  %s1 = inlined_call_operand.hbm [shape: bf16[32,256], index: 1, kind: input, shape index: {}]
  %s2 = inlined_call_operand.hbm [shape: f32[1,256], index: 2, kind: input, shape index: {}]
  %s3 = inlined_call_operand.hbm [shape: bf16[256,256], index: 3, kind: input, shape index: {}]
  %s4 = inlined_call_operand.hbm [shape: f32[1,256], index: 4, kind: input, shape index: {}]
  %s5 = inlined_call_operand.hbm [shape: bf16[256,128], index: 5, kind: input, shape index: {}]
  %s6 = inlined_call_operand.vmem [shape: f32[1,128], index: 6, kind: input, shape index: {}]
  %s7 = inlined_call_operand.hbm [shape: bf16[128,128], index: 7, kind: input, shape index: {}]
  %s8 = inlined_call_operand.vmem [shape: f32[1,128], index: 8, kind: input, shape index: {}]
  %s9 = inlined_call_operand.hbm [shape: f32[8,128], index: 9, kind: output, shape index: {}]
  %s10 = sld [smem:[#allocation0]]
  $region74: #{replacement_dqn_forward.1} parent=0
    _
  %s12 = ssub.s32 1, %s10
  %s13 = scalar_select 0, %s12, %s10
  $region1: #{replacement_dqn_forward.1} parent=0
    #allocation2 [shape = 'u8[4096]{0}', space=vmem, size = 0x1000, scoped, tag = 'input window, operand 0, single buffered']
    #allocation3 [shape = 's32[1]{0}', space=sflag, size = 0x4, scoped, tag = 'scoped memory for replacement_dqn_forward.1']
    #allocation4 [shape = 's32[1]{0}', space=sflag, size = 0x4, scoped, tag = 'scoped memory for replacement_dqn_forward.1']
    #allocation5 [shape = 'u8[16384]{0}', space=vmem, size = 0x4000, scoped, tag = 'input window, operand 1, single buffered']
    #allocation6 [shape = 's32[1]{0}', space=sflag, size = 0x4, scoped, tag = 'scoped memory for replacement_dqn_forward.1']
    #allocation7 [shape = 'u8[1024]{0}', space=vmem, size = 0x400, scoped, tag = 'input window, operand 2, single buffered']
    #allocation8 [shape = 'u8[131072]{0}', space=vmem, size = 0x20000, scoped, tag = 'input window, operand 3, single buffered']
    #allocation9 [shape = 's32[1]{0}', space=sflag, size = 0x4, scoped, tag = 'scoped memory for replacement_dqn_forward.1']
    #allocation10 [shape = 'u8[1024]{0}', space=vmem, size = 0x400, scoped, tag = 'input window, operand 4, single buffered']
    #allocation11 [shape = 'u8[65536]{0}', space=vmem, size = 0x10000, scoped, tag = 'input window, operand 5, single buffered']
    #allocation12 [shape = 's32[1]{0}', space=sflag, size = 0x4, scoped, tag = 'scoped memory for replacement_dqn_forward.1']
    #allocation13 [shape = 'u8[32768]{0}', space=vmem, size = 0x8000, scoped, tag = 'input window, operand 7, single buffered']
    #allocation14 [shape = 'u8[4096]{0}', space=vmem, size = 0x1000, scoped, tag = 'output window, operand 0, single buffered']
    %14 = vsyncpa [#allocation3], 0
    %15 = vsyncpa [#allocation6], 0
    %16 = vsyncpa [#allocation9], 0
    %17 = vsyncpa [#allocation12], 0
    %18 = vsyncpa [#allocation4], 0
    // Predicated region
    $region2: #{replacement_dqn_forward.1} parent=1 // pred_check
      _
    $region3: #{replacement_dqn_forward.1} parent=1 // pred_check_branch
      %20 = sbr.rel (0) target = $region5
    $region4: #{replacement_dqn_forward.1} parent=1 // pred_region
      %22 = vsyncadd [#allocation3], 0
      %s24 = sshll.u32 %s0, 4
      %s25 = int_to_ptr.hbm [resolvable:$true] %s24
      %s26 = sshll.u32 [#allocation2], 4
      %s27 = int_to_ptr.vmem [resolvable:$true] %s26
      %29 = dma.hbm_to_vmem [thread:$0]  %s25, 128, %s27, [#allocation3]
    $region5: #{replacement_dqn_forward.1} parent=1 // pred_fallthru
      _
    // Predicated region
    $region6: #{replacement_dqn_forward.1} parent=1 // pred_check
      _
    $region7: #{replacement_dqn_forward.1} parent=1 // pred_check_branch
      %31 = sbr.rel (0) target = $region9
    $region8: #{replacement_dqn_forward.1} parent=1 // pred_region
      %33 = vsyncadd [#allocation6], 0
      %s34 = sshll.u32 %s1, 4
      %s35 = int_to_ptr.hbm [resolvable:$true] %s34
      %s36 = sshll.u32 [#allocation5], 4
      %s37 = int_to_ptr.vmem [resolvable:$true] %s36
      %42 = dma.hbm_to_vmem [thread:$0]  %s35, 512, %s37, [#allocation6], 128, 128, 8
    $region9: #{replacement_dqn_forward.1} parent=1 // pred_fallthru
      _
    // Predicated region
    $region10: #{replacement_dqn_forward.1} parent=1 // pred_check
      _
    $region11: #{replacement_dqn_forward.1} parent=1 // pred_check_branch
      %44 = sbr.rel (0) target = $region13
    $region12: #{replacement_dqn_forward.1} parent=1 // pred_region
      %46 = vsyncadd [#allocation6], 0
      %s48 = sshll.u32 %s2, 4
      %s49 = int_to_ptr.hbm [resolvable:$true] %s48
      %s50 = sshll.u32 [#allocation7], 4
      %s51 = int_to_ptr.vmem [resolvable:$true] %s50
      %53 = dma.hbm_to_vmem [thread:$0]  %s49, 32, %s51, [#allocation6]
    $region13: #{replacement_dqn_forward.1} parent=1 // pred_fallthru
      _
    // Predicated region
    $region14: #{replacement_dqn_forward.1} parent=1 // pred_check
      _
    $region15: #{replacement_dqn_forward.1} parent=1 // pred_check_branch
      %55 = sbr.rel (0) target = $region17
    $region16: #{replacement_dqn_forward.1} parent=1 // pred_region
      %57 = vsyncadd [#allocation9], 0
      %s58 = sshll.u32 %s3, 4
      %s59 = int_to_ptr.hbm [resolvable:$true] %s58
      %s60 = sshll.u32 [#allocation8], 4
      %s61 = int_to_ptr.vmem [resolvable:$true] %s60
      %66 = dma.hbm_to_vmem [thread:$0]  %s59, 4096, %s61, [#allocation9], 128, 128, 8
    $region17: #{replacement_dqn_forward.1} parent=1 // pred_fallthru
      _
    // Predicated region
    $region18: #{replacement_dqn_forward.1} parent=1 // pred_check
      _
    $region19: #{replacement_dqn_forward.1} parent=1 // pred_check_branch
      %68 = sbr.rel (0) target = $region21
    $region20: #{replacement_dqn_forward.1} parent=1 // pred_region
      %70 = vsyncadd [#allocation9], 0
      %s72 = sshll.u32 %s4, 4
      %s73 = int_to_ptr.hbm [resolvable:$true] %s72
      %s74 = sshll.u32 [#allocation10], 4
      %s75 = int_to_ptr.vmem [resolvable:$true] %s74
      %77 = dma.hbm_to_vmem [thread:$0]  %s73, 32, %s75, [#allocation9]
    $region21: #{replacement_dqn_forward.1} parent=1 // pred_fallthru
      _
    // Predicated region
    $region22: #{replacement_dqn_forward.1} parent=1 // pred_check
      _
    $region23: #{replacement_dqn_forward.1} parent=1 // pred_check_branch
      %79 = sbr.rel (0) target = $region25
    $region24: #{replacement_dqn_forward.1} parent=1 // pred_region
      %81 = vsyncadd [#allocation12], 0
      %s82 = sshll.u32 %s5, 4
      %s83 = int_to_ptr.hbm [resolvable:$true] %s82
      %s84 = sshll.u32 [#allocation11], 4
      %s85 = int_to_ptr.vmem [resolvable:$true] %s84
      %90 = dma.hbm_to_vmem [thread:$0]  %s83, 2048, %s85, [#allocation12], 64, 64, 4
    $region25: #{replacement_dqn_forward.1} parent=1 // pred_fallthru
      _
    // Predicated region
    $region26: #{replacement_dqn_forward.1} parent=1 // pred_check
      _
    $region27: #{replacement_dqn_forward.1} parent=1 // pred_check_branch
      %92 = sbr.rel (0) target = $region29
    $region28: #{replacement_dqn_forward.1} parent=1 // pred_region
      _
    $region29: #{replacement_dqn_forward.1} parent=1 // pred_fallthru
      _
    // Predicated region
    $region30: #{replacement_dqn_forward.1} parent=1 // pred_check
      _
    $region31: #{replacement_dqn_forward.1} parent=1 // pred_check_branch
      %94 = sbr.rel (0) target = $region33
    $region32: #{replacement_dqn_forward.1} parent=1 // pred_region
      %96 = vsyncadd [#allocation12], 0
      %s97 = sshll.u32 %s7, 4
      %s98 = int_to_ptr.hbm [resolvable:$true] %s97
      %s99 = sshll.u32 [#allocation13], 4
      %s100 = int_to_ptr.vmem [resolvable:$true] %s99
      %105 = dma.hbm_to_vmem [thread:$0]  %s98, 1024, %s100, [#allocation12], 64, 64, 4
    $region33: #{replacement_dqn_forward.1} parent=1 // pred_fallthru
      _
    // Predicated region
    $region34: #{replacement_dqn_forward.1} parent=1 // pred_check
      _
    $region35: #{replacement_dqn_forward.1} parent=1 // pred_check_branch
      %107 = sbr.rel (0) target = $region37
    $region36: #{replacement_dqn_forward.1} parent=1 // pred_region
      _
    $region37: #{replacement_dqn_forward.1} parent=1 // pred_fallthru
      _
    // Predicated region
    $region38: #{replacement_dqn_forward.1} parent=1 // pred_check
      _
    $region39: #{replacement_dqn_forward.1} parent=1 // pred_check_branch
      %109 = sbr.rel (0) target = $region41
    $region40: #{replacement_dqn_forward.1} parent=1 // pred_region
      %111 = dma.done [#allocation3], 128
    $region41: #{replacement_dqn_forward.1} parent=1 // pred_fallthru
      _
    // Predicated region
    $region42: #{replacement_dqn_forward.1} parent=1 // pred_check
      _
    $region43: #{replacement_dqn_forward.1} parent=1 // pred_check_branch
      %113 = sbr.rel (0) target = $region45
    $region44: #{replacement_dqn_forward.1} parent=1 // pred_region
      %115 = dma.done [#allocation6], 512
    $region45: #{replacement_dqn_forward.1} parent=1 // pred_fallthru
      _
    // Predicated region
    $region46: #{replacement_dqn_forward.1} parent=1 // pred_check
      _
    $region47: #{replacement_dqn_forward.1} parent=1 // pred_check_branch
      %117 = sbr.rel (0) target = $region49
    $region48: #{replacement_dqn_forward.1} parent=1 // pred_region
      %119 = dma.done [#allocation6], 32
    $region49: #{replacement_dqn_forward.1} parent=1 // pred_fallthru
      _
    // Predicated region
    $region50: #{replacement_dqn_forward.1} parent=1 // pred_check
      _
    $region51: #{replacement_dqn_forward.1} parent=1 // pred_check_branch
      %121 = sbr.rel (0) target = $region53
    $region52: #{replacement_dqn_forward.1} parent=1 // pred_region
      %123 = dma.done [#allocation9], 4096
    $region53: #{replacement_dqn_forward.1} parent=1 // pred_fallthru
      _
    // Predicated region
    $region54: #{replacement_dqn_forward.1} parent=1 // pred_check
      _
    $region55: #{replacement_dqn_forward.1} parent=1 // pred_check_branch
      %125 = sbr.rel (0) target = $region57
    $region56: #{replacement_dqn_forward.1} parent=1 // pred_region
      %127 = dma.done [#allocation9], 32
    $region57: #{replacement_dqn_forward.1} parent=1 // pred_fallthru
      _
    // Predicated region
    $region58: #{replacement_dqn_forward.1} parent=1 // pred_check
      _
    $region59: #{replacement_dqn_forward.1} parent=1 // pred_check_branch
      %129 = sbr.rel (0) target = $region61
    $region60: #{replacement_dqn_forward.1} parent=1 // pred_region
      %131 = dma.done [#allocation12], 2048
    $region61: #{replacement_dqn_forward.1} parent=1 // pred_fallthru
      _
    // Predicated region
    $region62: #{replacement_dqn_forward.1} parent=1 // pred_check
      _
    $region63: #{replacement_dqn_forward.1} parent=1 // pred_check_branch
      %133 = sbr.rel (0) target = $region65
    $region64: #{replacement_dqn_forward.1} parent=1 // pred_region
      %135 = dma.done [#allocation12], 1024
    $region65: #{replacement_dqn_forward.1} parent=1 // pred_fallthru
      _
    %v137 = vld [vmem:[#allocation2] sm:$0xff]
    %v138 = vpack.c.bf16 %v137, %v137
    %v139 = vld [vmem:[#allocation5] sm:$0xff]
    %v140 = vld [vmem:[#allocation5 + $0x8] sm:$0xff]
    %v141 = vld [vmem:[#allocation5 + $0x10] sm:$0xff]
    %v142 = vld [vmem:[#allocation5 + $0x18] sm:$0xff]
    %v143 = vld [vmem:[#allocation7] sm:$0x3]
    %v145 = vperm.slane %v143, 0
    %v146 = vperm.slane %v143, 1
    %v153 = vunpack.c.l.b16 %v139
    %v154 = vunpack.c.h.b16 %v139
    %v155 = vunpack.c.l.b16 %v140
    %v156 = vunpack.c.h.b16 %v140
    %v157 = vunpack.c.l.b16 %v141
    %v158 = vunpack.c.h.b16 %v141
    %v159 = vunpack.c.l.b16 %v142
    %v160 = vunpack.c.h.b16 %v142
    %v161 = vpack.c.b16 %v155, %v153
    %v162 = vpack.c.b16 %v156, %v154
    %v163 = vpack.c.b16 %v159, %v157
    %v164 = vpack.c.b16 %v160, %v158
    %vm169 = vcmask 261120
    %v171 = vsel %vm169, %v138, 0
    %173 = vmatpush.bf16.msra.mxu0 0
    %174 = vmatpush.bf16.msra.mxu0 0
    %175 = vmatpush.bf16.msra.mxu0 0
    %176 = vmatpush.bf16.msra.mxu0 0
    %177 = vmatpush.bf16.msra.mxu0 0
    %178 = vmatpush.bf16.msra.mxu0 0
    %179 = vmatpush.bf16.msra.mxu0 %v163
    %180 = vmatpush.bf16.msra.mxu0 %v161
    %181 = vmatmul.bf16.gmra.mxu0 %v171
    %v182 = vpop.f32.mrf.mxu0
    %v183 = vadd.f32 %v145, %v182
    %v184 = vpop.f32.mrf.mxu0
    %185 = vdwg.mxu0
    %186 = vmatpush.bf16.msra.mxu0 0
    %187 = vmatpush.bf16.msra.mxu0 0
    %188 = vmatpush.bf16.msra.mxu0 0
    %189 = vmatpush.bf16.msra.mxu0 0
    %190 = vmatpush.bf16.msra.mxu0 0
    %191 = vmatpush.bf16.msra.mxu0 0
    %192 = vmatpush.bf16.msra.mxu0 %v164
    %193 = vmatpush.bf16.msra.mxu0 %v162
    %194 = vmatmul.bf16.gmra.mxu0 %v171
    %v195 = vpop.f32.mrf.mxu0
    %v196 = vadd.f32 %v146, %v195
    %v197 = vpop.f32.mrf.mxu0
    %198 = vdwg.mxu0
    %v199 = vmax.f32 %v183, 0.0
    %v200 = vmax.f32 %v196, 0.0
    %v201 = vpack.c.bf16 %v199, %v199
    %v202 = vpack.c.bf16 %v200, %v200
    %v203 = vld [vmem:[#allocation8] sm:$0xff]
    %v204 = vld [vmem:[#allocation8 + $0x8] sm:$0xff]
    %v205 = vld [vmem:[#allocation8 + $0x10] sm:$0xff]
    %v206 = vld [vmem:[#allocation8 + $0x18] sm:$0xff]
    %v207 = vld [vmem:[#allocation8 + $0x20] sm:$0xff]
    %v208 = vld [vmem:[#allocation8 + $0x28] sm:$0xff]
    %v209 = vld [vmem:[#allocation8 + $0x30] sm:$0xff]
    %v210 = vld [vmem:[#allocation8 + $0x38] sm:$0xff]
    %v211 = vld [vmem:[#allocation8 + $0x40] sm:$0xff]
    %v212 = vld [vmem:[#allocation8 + $0x48] sm:$0xff]
    %v213 = vld [vmem:[#allocation8 + $0x50] sm:$0xff]
    %v214 = vld [vmem:[#allocation8 + $0x58] sm:$0xff]
    %v215 = vld [vmem:[#allocation8 + $0x60] sm:$0xff]
    %v216 = vld [vmem:[#allocation8 + $0x68] sm:$0xff]
    %v217 = vld [vmem:[#allocation8 + $0x70] sm:$0xff]
    %v218 = vld [vmem:[#allocation8 + $0x78] sm:$0xff]
    %v219 = vld [vmem:[#allocation8 + $0x80] sm:$0xff]
    %v220 = vld [vmem:[#allocation8 + $0x88] sm:$0xff]
    %v221 = vld [vmem:[#allocation8 + $0x90] sm:$0xff]
    %v222 = vld [vmem:[#allocation8 + $0x98] sm:$0xff]
    %v223 = vld [vmem:[#allocation8 + $0xa0] sm:$0xff]
    %v224 = vld [vmem:[#allocation8 + $0xa8] sm:$0xff]
    %v225 = vld [vmem:[#allocation8 + $0xb0] sm:$0xff]
    %v226 = vld [vmem:[#allocation8 + $0xb8] sm:$0xff]
    %v227 = vld [vmem:[#allocation8 + $0xc0] sm:$0xff]
    %v228 = vld [vmem:[#allocation8 + $0xc8] sm:$0xff]
    %v229 = vld [vmem:[#allocation8 + $0xd0] sm:$0xff]
    %v230 = vld [vmem:[#allocation8 + $0xd8] sm:$0xff]
    %v231 = vld [vmem:[#allocation8 + $0xe0] sm:$0xff]
    %v232 = vld [vmem:[#allocation8 + $0xe8] sm:$0xff]
    %v233 = vld [vmem:[#allocation8 + $0xf0] sm:$0xff]
    %v234 = vld [vmem:[#allocation8 + $0xf8] sm:$0xff]
    %v235 = vld [vmem:[#allocation10] sm:$0x3]
    %v237 = vperm.slane %v235, 0
    %v238 = vperm.slane %v235, 1
    %v273 = vunpack.c.l.b16 %v203
    %v274 = vunpack.c.h.b16 %v203
    %v275 = vunpack.c.l.b16 %v204
    %v276 = vunpack.c.h.b16 %v204
    %v277 = vunpack.c.l.b16 %v205
    %v278 = vunpack.c.h.b16 %v205
    %v279 = vunpack.c.l.b16 %v206
    %v280 = vunpack.c.h.b16 %v206
    %v281 = vunpack.c.l.b16 %v207
    %v282 = vunpack.c.h.b16 %v207
    %v283 = vunpack.c.l.b16 %v208
    %v284 = vunpack.c.h.b16 %v208
    %v285 = vunpack.c.l.b16 %v209
    %v286 = vunpack.c.h.b16 %v209
    %v287 = vunpack.c.l.b16 %v210
    %v288 = vunpack.c.h.b16 %v210
    %v289 = vunpack.c.l.b16 %v211
    %v290 = vunpack.c.h.b16 %v211
    %v291 = vunpack.c.l.b16 %v212
    %v292 = vunpack.c.h.b16 %v212
    %v293 = vunpack.c.l.b16 %v213
    %v294 = vunpack.c.h.b16 %v213
    %v295 = vunpack.c.l.b16 %v214
    %v296 = vunpack.c.h.b16 %v214
    %v297 = vunpack.c.l.b16 %v215
    %v298 = vunpack.c.h.b16 %v215
    %v299 = vunpack.c.l.b16 %v216
    %v300 = vunpack.c.h.b16 %v216
    %v301 = vunpack.c.l.b16 %v217
    %v302 = vunpack.c.h.b16 %v217
    %v303 = vunpack.c.l.b16 %v218
    %v304 = vunpack.c.h.b16 %v218
    %v305 = vunpack.c.l.b16 %v219
    %v306 = vunpack.c.h.b16 %v219
    %v307 = vunpack.c.l.b16 %v220
    %v308 = vunpack.c.h.b16 %v220
    %v309 = vunpack.c.l.b16 %v221
    %v310 = vunpack.c.h.b16 %v221
    %v311 = vunpack.c.l.b16 %v222
    %v312 = vunpack.c.h.b16 %v222
    %v313 = vunpack.c.l.b16 %v223
    %v314 = vunpack.c.h.b16 %v223
    %v315 = vunpack.c.l.b16 %v224
    %v316 = vunpack.c.h.b16 %v224
    %v317 = vunpack.c.l.b16 %v225
    %v318 = vunpack.c.h.b16 %v225
    %v319 = vunpack.c.l.b16 %v226
    %v320 = vunpack.c.h.b16 %v226
    %v321 = vunpack.c.l.b16 %v227
    %v322 = vunpack.c.h.b16 %v227
    %v323 = vunpack.c.l.b16 %v228
    %v324 = vunpack.c.h.b16 %v228
    %v325 = vunpack.c.l.b16 %v229
    %v326 = vunpack.c.h.b16 %v229
    %v327 = vunpack.c.l.b16 %v230
    %v328 = vunpack.c.h.b16 %v230
    %v329 = vunpack.c.l.b16 %v231
    %v330 = vunpack.c.h.b16 %v231
    %v331 = vunpack.c.l.b16 %v232
    %v332 = vunpack.c.h.b16 %v232
    %v333 = vunpack.c.l.b16 %v233
    %v334 = vunpack.c.h.b16 %v233
    %v335 = vunpack.c.l.b16 %v234
    %v336 = vunpack.c.h.b16 %v234
    %v337 = vpack.c.b16 %v275, %v273
    %v338 = vpack.c.b16 %v276, %v274
    %v339 = vpack.c.b16 %v279, %v277
    %v340 = vpack.c.b16 %v280, %v278
    %v341 = vpack.c.b16 %v283, %v281
    %v342 = vpack.c.b16 %v284, %v282
    %v343 = vpack.c.b16 %v287, %v285
    %v344 = vpack.c.b16 %v288, %v286
    %v345 = vpack.c.b16 %v291, %v289
    %v346 = vpack.c.b16 %v292, %v290
    %v347 = vpack.c.b16 %v295, %v293
    %v348 = vpack.c.b16 %v296, %v294
    %v349 = vpack.c.b16 %v299, %v297
    %v350 = vpack.c.b16 %v300, %v298
    %v351 = vpack.c.b16 %v303, %v301
    %v352 = vpack.c.b16 %v304, %v302
    %v353 = vpack.c.b16 %v307, %v305
    %v354 = vpack.c.b16 %v308, %v306
    %v355 = vpack.c.b16 %v311, %v309
    %v356 = vpack.c.b16 %v312, %v310
    %v357 = vpack.c.b16 %v315, %v313
    %v358 = vpack.c.b16 %v316, %v314
    %v359 = vpack.c.b16 %v319, %v317
    %v360 = vpack.c.b16 %v320, %v318
    %v361 = vpack.c.b16 %v323, %v321
    %v362 = vpack.c.b16 %v324, %v322
    %v363 = vpack.c.b16 %v327, %v325
    %v364 = vpack.c.b16 %v328, %v326
    %v365 = vpack.c.b16 %v331, %v329
    %v366 = vpack.c.b16 %v332, %v330
    %v367 = vpack.c.b16 %v335, %v333
    %v368 = vpack.c.b16 %v336, %v334
    %401 = vmatpush.bf16.msra.mxu0 %v351
    %402 = vmatpush.bf16.msra.mxu0 %v349
    %403 = vmatpush.bf16.msra.mxu0 %v347
    %404 = vmatpush.bf16.msra.mxu0 %v345
    %405 = vmatpush.bf16.msra.mxu0 %v343
    %406 = vmatpush.bf16.msra.mxu0 %v341
    %407 = vmatpush.bf16.msra.mxu0 %v339
    %408 = vmatpush.bf16.msra.mxu0 %v337
    %409 = vmatmul.bf16.gmra.mxu0 %v201
    %v410 = vpop.f32.mrf.mxu0
    %v411 = vadd.f32 %v237, %v410
    %v412 = vpop.f32.mrf.mxu0
    %413 = vdwg.mxu0
    %414 = vmatpush.bf16.msra.mxu0 %v367
    %415 = vmatpush.bf16.msra.mxu0 %v365
    %416 = vmatpush.bf16.msra.mxu0 %v363
    %417 = vmatpush.bf16.msra.mxu0 %v361
    %418 = vmatpush.bf16.msra.mxu0 %v359
    %419 = vmatpush.bf16.msra.mxu0 %v357
    %420 = vmatpush.bf16.msra.mxu0 %v355
    %421 = vmatpush.bf16.msra.mxu0 %v353
    %422 = vmatmul.bf16.gmra.mxu0 %v202
    %v423 = vpop.f32.mrf.mxu0
    %v424 = vadd.f32 %v411, %v423
    %v425 = vpop.f32.mrf.mxu0
    %426 = vdwg.mxu0
    %427 = vmatpush.bf16.msra.mxu0 %v352
    %428 = vmatpush.bf16.msra.mxu0 %v350
    %429 = vmatpush.bf16.msra.mxu0 %v348
    %430 = vmatpush.bf16.msra.mxu0 %v346
    %431 = vmatpush.bf16.msra.mxu0 %v344
    %432 = vmatpush.bf16.msra.mxu0 %v342
    %433 = vmatpush.bf16.msra.mxu0 %v340
    %434 = vmatpush.bf16.msra.mxu0 %v338
    %435 = vmatmul.bf16.gmra.mxu0 %v201
    %v436 = vpop.f32.mrf.mxu0
    %v437 = vadd.f32 %v238, %v436
    %v438 = vpop.f32.mrf.mxu0
    %439 = vdwg.mxu0
    %440 = vmatpush.bf16.msra.mxu0 %v368
    %441 = vmatpush.bf16.msra.mxu0 %v366
    %442 = vmatpush.bf16.msra.mxu0 %v364
    %443 = vmatpush.bf16.msra.mxu0 %v362
    %444 = vmatpush.bf16.msra.mxu0 %v360
    %445 = vmatpush.bf16.msra.mxu0 %v358
    %446 = vmatpush.bf16.msra.mxu0 %v356
    %447 = vmatpush.bf16.msra.mxu0 %v354
    %448 = vmatmul.bf16.gmra.mxu0 %v202
    %v449 = vpop.f32.mrf.mxu0
    %v450 = vadd.f32 %v437, %v449
    %v451 = vpop.f32.mrf.mxu0
    %452 = vdwg.mxu0
    %v453 = vmax.f32 %v424, 0.0
    %v454 = vmax.f32 %v450, 0.0
    %v455 = vpack.c.bf16 %v453, %v453
    %v456 = vpack.c.bf16 %v454, %v454
    %v457 = vld [vmem:[#allocation11] sm:$0xf]
    %v458 = vld [vmem:[#allocation11 + $0x4] sm:$0xf]
    %v459 = vld [vmem:[#allocation11 + $0x8] sm:$0xf]
    %v460 = vld [vmem:[#allocation11 + $0xc] sm:$0xf]
    %v461 = vld [vmem:[#allocation11 + $0x10] sm:$0xf]
    %v462 = vld [vmem:[#allocation11 + $0x14] sm:$0xf]
    %v463 = vld [vmem:[#allocation11 + $0x18] sm:$0xf]
    %v464 = vld [vmem:[#allocation11 + $0x1c] sm:$0xf]
    %v465 = vld [vmem:[#allocation11 + $0x20] sm:$0xf]
    %v466 = vld [vmem:[#allocation11 + $0x24] sm:$0xf]
    %v467 = vld [vmem:[#allocation11 + $0x28] sm:$0xf]
    %v468 = vld [vmem:[#allocation11 + $0x2c] sm:$0xf]
    %v469 = vld [vmem:[#allocation11 + $0x30] sm:$0xf]
    %v470 = vld [vmem:[#allocation11 + $0x34] sm:$0xf]
    %v471 = vld [vmem:[#allocation11 + $0x38] sm:$0xf]
    %v472 = vld [vmem:[#allocation11 + $0x3c] sm:$0xf]
    %v473 = vld [vmem:[#allocation11 + $0x40] sm:$0xf]
    %v474 = vld [vmem:[#allocation11 + $0x44] sm:$0xf]
    %v475 = vld [vmem:[#allocation11 + $0x48] sm:$0xf]
    %v476 = vld [vmem:[#allocation11 + $0x4c] sm:$0xf]
    %v477 = vld [vmem:[#allocation11 + $0x50] sm:$0xf]
    %v478 = vld [vmem:[#allocation11 + $0x54] sm:$0xf]
    %v479 = vld [vmem:[#allocation11 + $0x58] sm:$0xf]
    %v480 = vld [vmem:[#allocation11 + $0x5c] sm:$0xf]
    %v481 = vld [vmem:[#allocation11 + $0x60] sm:$0xf]
    %v482 = vld [vmem:[#allocation11 + $0x64] sm:$0xf]
    %v483 = vld [vmem:[#allocation11 + $0x68] sm:$0xf]
    %v484 = vld [vmem:[#allocation11 + $0x6c] sm:$0xf]
    %v485 = vld [vmem:[#allocation11 + $0x70] sm:$0xf]
    %v486 = vld [vmem:[#allocation11 + $0x74] sm:$0xf]
    %v487 = vld [vmem:[#allocation11 + $0x78] sm:$0xf]
    %v488 = vld [vmem:[#allocation11 + $0x7c] sm:$0xf]
    %v489 = vld [vmem:[%s6] sm:$0x1]
    %v491 = vperm.slane %v489, 0
    %v525 = vunpack.c.l.b16 %v457
    %v526 = vunpack.c.l.b16 %v458
    %v527 = vunpack.c.l.b16 %v459
    %v528 = vunpack.c.l.b16 %v460
    %v529 = vunpack.c.l.b16 %v461
    %v530 = vunpack.c.l.b16 %v462
    %v531 = vunpack.c.l.b16 %v463
    %v532 = vunpack.c.l.b16 %v464
    %v533 = vunpack.c.l.b16 %v465
    %v534 = vunpack.c.l.b16 %v466
    %v535 = vunpack.c.l.b16 %v467
    %v536 = vunpack.c.l.b16 %v468
    %v537 = vunpack.c.l.b16 %v469
    %v538 = vunpack.c.l.b16 %v470
    %v539 = vunpack.c.l.b16 %v471
    %v540 = vunpack.c.l.b16 %v472
    %v541 = vunpack.c.l.b16 %v473
    %v542 = vunpack.c.l.b16 %v474
    %v543 = vunpack.c.l.b16 %v475
    %v544 = vunpack.c.l.b16 %v476
    %v545 = vunpack.c.l.b16 %v477
    %v546 = vunpack.c.l.b16 %v478
    %v547 = vunpack.c.l.b16 %v479
    %v548 = vunpack.c.l.b16 %v480
    %v549 = vunpack.c.l.b16 %v481
    %v550 = vunpack.c.l.b16 %v482
    %v551 = vunpack.c.l.b16 %v483
    %v552 = vunpack.c.l.b16 %v484
    %v553 = vunpack.c.l.b16 %v485
    %v554 = vunpack.c.l.b16 %v486
    %v555 = vunpack.c.l.b16 %v487
    %v556 = vunpack.c.l.b16 %v488
    %v557 = vpack.c.b16 %v526, %v525
    %v558 = vpack.c.b16 %v528, %v527
    %v559 = vpack.c.b16 %v530, %v529
    %v560 = vpack.c.b16 %v532, %v531
    %v561 = vpack.c.b16 %v534, %v533
    %v562 = vpack.c.b16 %v536, %v535
    %v563 = vpack.c.b16 %v538, %v537
    %v564 = vpack.c.b16 %v540, %v539
    %v565 = vpack.c.b16 %v542, %v541
    %v566 = vpack.c.b16 %v544, %v543
    %v567 = vpack.c.b16 %v546, %v545
    %v568 = vpack.c.b16 %v548, %v547
    %v569 = vpack.c.b16 %v550, %v549
    %v570 = vpack.c.b16 %v552, %v551
    %v571 = vpack.c.b16 %v554, %v553
    %v572 = vpack.c.b16 %v556, %v555
    %589 = vmatpush.bf16.msra.mxu0 %v564
    %590 = vmatpush.bf16.msra.mxu0 %v563
    %591 = vmatpush.bf16.msra.mxu0 %v562
    %592 = vmatpush.bf16.msra.mxu0 %v561
    %593 = vmatpush.bf16.msra.mxu0 %v560
    %594 = vmatpush.bf16.msra.mxu0 %v559
    %595 = vmatpush.bf16.msra.mxu0 %v558
    %596 = vmatpush.bf16.msra.mxu0 %v557
    %597 = vmatmul.bf16.gmra.mxu0 %v455
    %v598 = vpop.f32.mrf.mxu0
    %v599 = vadd.f32 %v491, %v598
    %v600 = vpop.f32.mrf.mxu0
    %601 = vdwg.mxu0
    %602 = vmatpush.bf16.msra.mxu0 %v572
    %603 = vmatpush.bf16.msra.mxu0 %v571
    %604 = vmatpush.bf16.msra.mxu0 %v570
    %605 = vmatpush.bf16.msra.mxu0 %v569
    %606 = vmatpush.bf16.msra.mxu0 %v568
    %607 = vmatpush.bf16.msra.mxu0 %v567
    %608 = vmatpush.bf16.msra.mxu0 %v566
    %609 = vmatpush.bf16.msra.mxu0 %v565
    %610 = vmatmul.bf16.gmra.mxu0 %v456
    %v611 = vpop.f32.mrf.mxu0
    %v612 = vadd.f32 %v599, %v611
    %v613 = vpop.f32.mrf.mxu0
    %614 = vdwg.mxu0
    %v615 = vmax.f32 %v612, 0.0
    %v616 = vpack.c.bf16 %v615, %v615
    %v617 = vld [vmem:[#allocation13] sm:$0xf]
    %v618 = vld [vmem:[#allocation13 + $0x4] sm:$0xf]
    %v619 = vld [vmem:[#allocation13 + $0x8] sm:$0xf]
    %v620 = vld [vmem:[#allocation13 + $0xc] sm:$0xf]
    %v621 = vld [vmem:[#allocation13 + $0x10] sm:$0xf]
    %v622 = vld [vmem:[#allocation13 + $0x14] sm:$0xf]
    %v623 = vld [vmem:[#allocation13 + $0x18] sm:$0xf]
    %v624 = vld [vmem:[#allocation13 + $0x1c] sm:$0xf]
    %v625 = vld [vmem:[#allocation13 + $0x20] sm:$0xf]
    %v626 = vld [vmem:[#allocation13 + $0x24] sm:$0xf]
    %v627 = vld [vmem:[#allocation13 + $0x28] sm:$0xf]
    %v628 = vld [vmem:[#allocation13 + $0x2c] sm:$0xf]
    %v629 = vld [vmem:[#allocation13 + $0x30] sm:$0xf]
    %v630 = vld [vmem:[#allocation13 + $0x34] sm:$0xf]
    %v631 = vld [vmem:[#allocation13 + $0x38] sm:$0xf]
    %v632 = vld [vmem:[#allocation13 + $0x3c] sm:$0xf]
    %v633 = vld [vmem:[%s8] sm:$0x1]
    %v635 = vperm.slane %v633, 0
    %v653 = vunpack.c.l.b16 %v617
    %v654 = vunpack.c.l.b16 %v618
    %v655 = vunpack.c.l.b16 %v619
    %v656 = vunpack.c.l.b16 %v620
    %v657 = vunpack.c.l.b16 %v621
    %v658 = vunpack.c.l.b16 %v622
    %v659 = vunpack.c.l.b16 %v623
    %v660 = vunpack.c.l.b16 %v624
    %v661 = vunpack.c.l.b16 %v625
    %v662 = vunpack.c.l.b16 %v626
    %v663 = vunpack.c.l.b16 %v627
    %v664 = vunpack.c.l.b16 %v628
    %v665 = vunpack.c.l.b16 %v629
    %v666 = vunpack.c.l.b16 %v630
    %v667 = vunpack.c.l.b16 %v631
    %v668 = vunpack.c.l.b16 %v632
    %v669 = vpack.c.b16 %v654, %v653
    %v670 = vpack.c.b16 %v656, %v655
    %v671 = vpack.c.b16 %v658, %v657
    %v672 = vpack.c.b16 %v660, %v659
    %v673 = vpack.c.b16 %v662, %v661
    %v674 = vpack.c.b16 %v664, %v663
    %v675 = vpack.c.b16 %v666, %v665
    %v676 = vpack.c.b16 %v668, %v667
    %685 = vmatpush.bf16.msra.mxu0 %v676
    %686 = vmatpush.bf16.msra.mxu0 %v675
    %687 = vmatpush.bf16.msra.mxu0 %v674
    %688 = vmatpush.bf16.msra.mxu0 %v673
    %689 = vmatpush.bf16.msra.mxu0 %v672
    %690 = vmatpush.bf16.msra.mxu0 %v671
    %691 = vmatpush.bf16.msra.mxu0 %v670
    %692 = vmatpush.bf16.msra.mxu0 %v669
    %693 = vmatmul.bf16.gmra.mxu0 %v616
    %v694 = vpop.f32.mrf.mxu0
    %v695 = vadd.f32 %v635, %v694
    %v696 = vpop.f32.mrf.mxu0
    %697 = vdwg.mxu0
    %698 = vst [vmem:[#allocation14] sm:$0xff] %v695
    // Predicated region
    $region66: #{replacement_dqn_forward.1} parent=1 // pred_check
      _
    $region67: #{replacement_dqn_forward.1} parent=1 // pred_check_branch
      %700 = sbr.rel (0) target = $region69
    $region68: #{replacement_dqn_forward.1} parent=1 // pred_region
      %702 = vsyncadd [#allocation4], 0
      %s704 = sshll.u32 [#allocation14], 4
      %s705 = int_to_ptr.vmem [resolvable:$true] %s704
      %s706 = sshll.u32 %s9, 4
      %s707 = int_to_ptr.hbm [resolvable:$true] %s706
      %709 = dma.vmem_to_hbm [thread:$0]  %s705, 128, %s707, [#allocation4]
    $region69: #{replacement_dqn_forward.1} parent=1 // pred_fallthru
      _
    // Predicated region
    $region70: #{replacement_dqn_forward.1} parent=1 // pred_check
      _
    $region71: #{replacement_dqn_forward.1} parent=1 // pred_check_branch
      %711 = sbr.rel (0) target = $region73
    $region72: #{replacement_dqn_forward.1} parent=1 // pred_region
      %713 = dma.done [#allocation4], 128
    $region73: #{replacement_dqn_forward.1} parent=1 // pred_fallthru
      _
    %714 = vsyncpa [#allocation3], 1
    %715 = vsyncpa [#allocation6], 1
    %716 = vsyncpa [#allocation9], 1
    %717 = vsyncpa [#allocation12], 1
    %718 = vsyncpa [#allocation4], 1

</llo_original>
